<compile_context>
chip_gen: v7x
topology: tpu7x:2x2x1
jax: 0.10.0
libtpu: 0.0.40
codegen_flags: <defaults>
</compile_context>

<pallas_src>
import jax
import jax.numpy as jnp
from jax.experimental import pallas as pl
from jax.experimental.pallas import tpu as pltpu

LANES = 128
SMALL_BATCH_MAX = 512   # below this, use the grid-less small kernel
TILE_G_MAX = 4096       # packed rows per block: 4096 * 512 B = 2 MiB x block


# --------------------- small-batch kernel (grid-less, VPU) -------------------
def small_linear_kernel(x_ref, w_ref, b_ref, o_ref):
    # x_ref: (B, K) f32, w_ref: (K, N) f32, b_ref: (1, N) f32, o_ref: (B, N)
    x = x_ref[...]
    w = w_ref[...]
    tb, k_dim = x_ref.shape
    n = w_ref.shape[1]
    acc = jnp.broadcast_to(b_ref[...], (tb, n)).astype(jnp.float32)
    for k in range(k_dim):  # K tiny (8): static unrolled VPU mul-add
        acc = acc + x[:, k:k + 1] * w[k:k + 1, :]
    o_ref[...] = acc.astype(o_ref.dtype)


# --------------- packed large-batch kernel (lane-dense, MXU) -----------------
def packed_linear_kernel(x_ref, w_ref, b_ref, o_ref):
    # x_ref: (TG, 128) f32  -- 16 original rows packed per 128-lane row
    # w_ref: (128, 96) f32  -- block-diagonal weight, block e = W^T (8x6)
    # b_ref: (1, 96)   f32  -- bias tiled 16x
    # o_ref: (TG, 96)  f32
    o_ref[...] = (jnp.dot(x_ref[...], w_ref[...],
                          preferred_element_type=jnp.float32)
                  + b_ref[...]).astype(o_ref.dtype)


# ------------------------------ param prep -----------------------------------
def prepare_params(weight, bias):
    """weight: (num_phases, input_size) as in nn.Linear; bias: (num_phases,).
    One-time layout prep (NOT per call)."""
    num_phases, input_size = weight.shape
    assert LANES % input_size == 0
    rows_per_pack = LANES // input_size                     # 16
    w_t = jnp.asarray(weight.T, jnp.float32)                # (K, N)
    b2 = jnp.asarray(bias, jnp.float32).reshape(1, num_phases)
    # block-diagonal weight: block (e, e) = W^T  ->  (128, 16*N)
    w_big = jnp.kron(jnp.eye(rows_per_pack, dtype=jnp.float32), w_t)
    b_big = jnp.tile(b2, (1, rows_per_pack))                # (1, 16*N)
    return w_t, b2, w_big, b_big


def _round_up(v, m):
    return (v + m - 1) // m * m


def _small_call(x, w_t, b2):
    B, K = x.shape
    N = w_t.shape[1]
    return pl.pallas_call(
        small_linear_kernel,
        out_shape=jax.ShapeDtypeStruct((B, N), jnp.float32),
        in_specs=[pl.BlockSpec(memory_space=pltpu.MemorySpace.VMEM)] * 3,
        out_specs=pl.BlockSpec(memory_space=pltpu.MemorySpace.VMEM),
        cost_estimate=pl.CostEstimate(
            flops=2 * B * K * N, transcendentals=0,
            bytes_accessed=4 * (B * K + K * N + N + B * N)),
    )(x, w_t, b2)


def _packed_call(x_main, w_big, b_big, rows_per_pack):
    B_main, K = x_main.shape
    NP = w_big.shape[1]                       # 16 * num_phases (= 96)
    G = B_main // rows_per_pack
    # zero-copy, row-major: 16 consecutive rows of 8 f32 -> one 128-lane row
    x_packed = x_main.reshape(G, rows_per_pack * K)
    # Tile: capped at TILE_G_MAX (~2 MiB x block) and shrunk so the grid has
    # at least 2 blocks (v7x megacore); blocks are multiples of 8 sublanes and
    # the partial last block is clipped by Pallas (no padding copies).
    tile_g = min(TILE_G_MAX, max(8, _round_up(pl.cdiv(G, 2), 8)))
    nb = pl.cdiv(G, tile_g)
    out_packed = pl.pallas_call(
        packed_linear_kernel,
        out_shape=jax.ShapeDtypeStruct((G, NP), jnp.float32),
        grid=(nb,),
        in_specs=[
            pl.BlockSpec((tile_g, rows_per_pack * K), lambda i: (i, 0)),
            pl.BlockSpec((rows_per_pack * K, NP), lambda i: (0, 0)),
            pl.BlockSpec((1, NP), lambda i: (0, 0)),
        ],
        out_specs=pl.BlockSpec((tile_g, NP), lambda i: (i, 0)),
        compiler_params=pltpu.CompilerParams(
            dimension_semantics=("parallel",)),
        cost_estimate=pl.CostEstimate(
            flops=2 * G * (rows_per_pack * K) * NP, transcendentals=0,
            bytes_accessed=4 * (G * rows_per_pack * K
                                + rows_per_pack * K * NP + NP + G * NP)),
    )(x_packed, w_big, b_big)
    N = NP // rows_per_pack
    # zero-copy reshape back: out_packed[r, 6e:6e+6] is output row 16r+e
    return out_packed.reshape(B_main, N)


@jax.jit
def traffic_light_forward(x, w_t, b2, w_big, b_big):
    """x: (B, input_size) f32. Returns (B, num_phases) f32 (nn.Linear fwd)."""
    B, K = x.shape
    rows_per_pack = w_big.shape[0] // K       # 16
    if B <= SMALL_BATCH_MAX:
        return _small_call(x, w_t, b2)
    B_main = (B // rows_per_pack) * rows_per_pack
    if B_main == B:
        # common case (B multiple of 16): fully copy-free packed MXU path
        return _packed_call(x, w_big, b_big, rows_per_pack)
    # ragged tail (< 16 rows): packed main part + tiny grid-less tail call.
    out_main = _packed_call(x[:B_main], w_big, b_big, rows_per_pack)
    out_tail = _small_call(x[B_main:], w_t, b2)
    return jnp.concatenate([out_main, out_tail], axis=0)


if __name__ == "__main__":
    input_size = 8    # 8 traffic-flow inputs
    num_phases = 6    # 6 output phases

    key = jax.random.PRNGKey(0)
    kx, kw, kb, kx2 = jax.random.split(key, 4)

    # Deterministic parameter init (mimics nn.Linear uniform(-1/sqrt(in), ..))
    bound = 1.0 / jnp.sqrt(jnp.float32(input_size))
    weight = jax.random.uniform(kw, (num_phases, input_size), jnp.float32,
                                -bound, bound)
    bias = jax.random.uniform(kb, (num_phases,), jnp.float32, -bound, bound)

    # One-time layout prep (pre-transposed weight, block-diagonal packed weight)
    w_t, b2, w_big, b_big = prepare_params(weight, bias)

    # --- small batch (typical module usage) ---
    x = jax.random.normal(kx, (2, input_size), jnp.float32)
    out = jax.block_until_ready(traffic_light_forward(x, w_t, b2, w_big, b_big))
    ref = x @ weight.T + bias
    assert out.shape == (2, num_phases)
    assert jnp.allclose(out, ref, atol=1e-5, rtol=1e-5)

    # --- large batch, multiple of 16: zero-copy packed MXU path ---
    xb = jax.random.normal(kx2, (4096, input_size), jnp.float32)
    outb = jax.block_until_ready(traffic_light_forward(xb, w_t, b2, w_big, b_big))
    refb = xb @ weight.T + bias
    assert outb.shape == (4096, num_phases)
    assert jnp.allclose(outb, refb, atol=1e-4, rtol=1e-4)

    # --- large ragged batch: packed main part + tail handling ---
    xc = jax.random.normal(kx, (1030, input_size), jnp.float32)
    outc = jax.block_until_ready(traffic_light_forward(xc, w_t, b2, w_big, b_big))
    refc = xc @ weight.T + bias
    assert outc.shape == (1030, num_phases)
    assert jnp.allclose(outc, refc, atol=1e-4, rtol=1e-4)

    print("KERNEL_OK")
</pallas_src>

<mosaic_0001>
module attributes {stable_mosaic.version = 11 : i64} {
  func.func @small_linear_kernel(%arg0: memref<2x8xf32, #tpu.memory_space<vmem>>, %arg1: memref<8x6xf32, #tpu.memory_space<vmem>>, %arg2: memref<1x6xf32, #tpu.memory_space<vmem>>, %arg3: memref<2x6xf32, #tpu.memory_space<vmem>>) attributes {dimension_semantics = [], scalar_prefetch = 0 : i64, scratch_operands = 0 : i64, tpu.core_type = #tpu.core_type<tc>} {
    %c0 = arith.constant 0 : index
    %c0_0 = arith.constant 0 : index
    %0 = vector.load %arg0[%c0, %c0_0] : memref<2x8xf32, #tpu.memory_space<vmem>>, vector<2x8xf32>
    %c0_1 = arith.constant 0 : index
    %c0_2 = arith.constant 0 : index
    %1 = vector.load %arg1[%c0_1, %c0_2] : memref<8x6xf32, #tpu.memory_space<vmem>>, vector<8x6xf32>
    %c0_3 = arith.constant 0 : index
    %c0_4 = arith.constant 0 : index
    %2 = vector.load %arg2[%c0_3, %c0_4] : memref<1x6xf32, #tpu.memory_space<vmem>>, vector<1x6xf32>
    %3 = vector.shape_cast %2 : vector<1x6xf32> to vector<1x6xf32>
    %4 = vector.broadcast %3 : vector<1x6xf32> to vector<2x6xf32>
    %5 = vector.extract_strided_slice %0 {offsets = [0, 0], sizes = [2, 1], strides = [1, 1]} : vector<2x8xf32> to vector<2x1xf32>
    %6 = vector.extract_strided_slice %1 {offsets = [0, 0], sizes = [1, 6], strides = [1, 1]} : vector<8x6xf32> to vector<1x6xf32>
    %7 = vector.broadcast %5 : vector<2x1xf32> to vector<2x6xf32>
    %8 = vector.broadcast %6 : vector<1x6xf32> to vector<2x6xf32>
    %9 = arith.mulf %7, %8 : vector<2x6xf32>
    %10 = arith.addf %4, %9 : vector<2x6xf32>
    %11 = vector.extract_strided_slice %0 {offsets = [0, 1], sizes = [2, 1], strides = [1, 1]} : vector<2x8xf32> to vector<2x1xf32>
    %12 = vector.extract_strided_slice %1 {offsets = [1, 0], sizes = [1, 6], strides = [1, 1]} : vector<8x6xf32> to vector<1x6xf32>
    %13 = vector.broadcast %11 : vector<2x1xf32> to vector<2x6xf32>
    %14 = vector.broadcast %12 : vector<1x6xf32> to vector<2x6xf32>
    %15 = arith.mulf %13, %14 : vector<2x6xf32>
    %16 = arith.addf %10, %15 : vector<2x6xf32>
    %17 = vector.extract_strided_slice %0 {offsets = [0, 2], sizes = [2, 1], strides = [1, 1]} : vector<2x8xf32> to vector<2x1xf32>
    %18 = vector.extract_strided_slice %1 {offsets = [2, 0], sizes = [1, 6], strides = [1, 1]} : vector<8x6xf32> to vector<1x6xf32>
    %19 = vector.broadcast %17 : vector<2x1xf32> to vector<2x6xf32>
    %20 = vector.broadcast %18 : vector<1x6xf32> to vector<2x6xf32>
    %21 = arith.mulf %19, %20 : vector<2x6xf32>
    %22 = arith.addf %16, %21 : vector<2x6xf32>
    %23 = vector.extract_strided_slice %0 {offsets = [0, 3], sizes = [2, 1], strides = [1, 1]} : vector<2x8xf32> to vector<2x1xf32>
    %24 = vector.extract_strided_slice %1 {offsets = [3, 0], sizes = [1, 6], strides = [1, 1]} : vector<8x6xf32> to vector<1x6xf32>
    %25 = vector.broadcast %23 : vector<2x1xf32> to vector<2x6xf32>
    %26 = vector.broadcast %24 : vector<1x6xf32> to vector<2x6xf32>
    %27 = arith.mulf %25, %26 : vector<2x6xf32>
    %28 = arith.addf %22, %27 : vector<2x6xf32>
    %29 = vector.extract_strided_slice %0 {offsets = [0, 4], sizes = [2, 1], strides = [1, 1]} : vector<2x8xf32> to vector<2x1xf32>
    %30 = vector.extract_strided_slice %1 {offsets = [4, 0], sizes = [1, 6], strides = [1, 1]} : vector<8x6xf32> to vector<1x6xf32>
    %31 = vector.broadcast %29 : vector<2x1xf32> to vector<2x6xf32>
    %32 = vector.broadcast %30 : vector<1x6xf32> to vector<2x6xf32>
    %33 = arith.mulf %31, %32 : vector<2x6xf32>
    %34 = arith.addf %28, %33 : vector<2x6xf32>
    %35 = vector.extract_strided_slice %0 {offsets = [0, 5], sizes = [2, 1], strides = [1, 1]} : vector<2x8xf32> to vector<2x1xf32>
    %36 = vector.extract_strided_slice %1 {offsets = [5, 0], sizes = [1, 6], strides = [1, 1]} : vector<8x6xf32> to vector<1x6xf32>
    %37 = vector.broadcast %35 : vector<2x1xf32> to vector<2x6xf32>
    %38 = vector.broadcast %36 : vector<1x6xf32> to vector<2x6xf32>
    %39 = arith.mulf %37, %38 : vector<2x6xf32>
    %40 = arith.addf %34, %39 : vector<2x6xf32>
    %41 = vector.extract_strided_slice %0 {offsets = [0, 6], sizes = [2, 1], strides = [1, 1]} : vector<2x8xf32> to vector<2x1xf32>
    %42 = vector.extract_strided_slice %1 {offsets = [6, 0], sizes = [1, 6], strides = [1, 1]} : vector<8x6xf32> to vector<1x6xf32>
    %43 = vector.broadcast %41 : vector<2x1xf32> to vector<2x6xf32>
    %44 = vector.broadcast %42 : vector<1x6xf32> to vector<2x6xf32>
    %45 = arith.mulf %43, %44 : vector<2x6xf32>
    %46 = arith.addf %40, %45 : vector<2x6xf32>
    %47 = vector.extract_strided_slice %0 {offsets = [0, 7], sizes = [2, 1], strides = [1, 1]} : vector<2x8xf32> to vector<2x1xf32>
    %48 = vector.extract_strided_slice %1 {offsets = [7, 0], sizes = [1, 6], strides = [1, 1]} : vector<8x6xf32> to vector<1x6xf32>
    %49 = vector.broadcast %47 : vector<2x1xf32> to vector<2x6xf32>
    %50 = vector.broadcast %48 : vector<1x6xf32> to vector<2x6xf32>
    %51 = arith.mulf %49, %50 : vector<2x6xf32>
    %52 = arith.addf %46, %51 : vector<2x6xf32>
    %c0_5 = arith.constant 0 : index
    %c0_6 = arith.constant 0 : index
    %53 = vector.load %arg3[%c0_5, %c0_6] : memref<2x6xf32, #tpu.memory_space<vmem>>, vector<2x6xf32>
    tpu.vector_store %arg3[%c0_5, %c0_6], %52 {strides = array<i32>} : memref<2x6xf32, #tpu.memory_space<vmem>>, vector<2x6xf32>,
    return
  }
}

</mosaic_0001>

<llo_original>
// kernel: traffic_light_forward.1
$region0: #{traffic_light_forward.1}
  #allocation0 [shape = 'u32[]', space=smem, size = 0x4, offset = 0x4, fixed_abs, tag = 'smem constant byte address 0x4 - core index']
  #allocation1 [shape = 'u32[144,128]{1,0:T(1,128)}', space=vmem, size = 0x12000, scoped, tag = 'internal scratch']
  %s0 = inlined_call_operand.hbm [shape: f32[2,8], index: 0, kind: input, shape index: {}]
  %s1 = inlined_call_operand.hbm [shape: f32[8,6], index: 1, kind: input, shape index: {}]
  %s2 = inlined_call_operand.vmem [shape: f32[1,6], index: 2, kind: input, shape index: {}]
  %s3 = inlined_call_operand.hbm [shape: f32[2,6], index: 3, kind: output, shape index: {}]
  %s4 = sld [smem:[#allocation0]]
  $region30: #{traffic_light_forward.1} parent=0
    _
  %s6 = ssub.s32 1, %s4
  %s7 = scalar_select 0, %s6, %s4
  $region1: #{traffic_light_forward.1} parent=0
    #allocation2 [shape = 'u8[1024]{0}', space=vmem, size = 0x400, scoped, tag = 'input window, operand 0, single buffered']
    #allocation3 [shape = 's32[1]{0}', space=sflag, size = 0x4, scoped, tag = 'scoped memory for traffic_light_forward.1']
    #allocation4 [shape = 's32[1]{0}', space=sflag, size = 0x4, scoped, tag = 'scoped memory for traffic_light_forward.1']
    #allocation5 [shape = 'u8[4096]{0}', space=vmem, size = 0x1000, scoped, tag = 'input window, operand 1, single buffered']
    #allocation6 [shape = 's32[1]{0}', space=sflag, size = 0x4, scoped, tag = 'scoped memory for traffic_light_forward.1']
    #allocation7 [shape = 'u8[1024]{0}', space=vmem, size = 0x400, scoped, tag = 'output window, operand 0, single buffered']
    %8 = vsyncpa [#allocation3], 0
    %9 = vsyncpa [#allocation6], 0
    %10 = vsyncpa [#allocation4], 0
    // Predicated region
    $region2: #{traffic_light_forward.1} parent=1 // pred_check
      _
    $region3: #{traffic_light_forward.1} parent=1 // pred_check_branch
      %12 = sbr.rel (0) target = $region5
    $region4: #{traffic_light_forward.1} parent=1 // pred_region
      %s14 = ssub.s32 32, 32
      %15 = vsyncadd [#allocation3], %s14
      %s17 = sshll.u32 [#allocation2], 4
      %s18 = int_to_ptr.vmem [resolvable:$true] %s17
      %20 = dma.hbm_to_vmem [thread:$0]  %s0, 32, %s18, [#allocation3]
    $region5: #{traffic_light_forward.1} parent=1 // pred_fallthru
      _
    // Predicated region
    $region6: #{traffic_light_forward.1} parent=1 // pred_check
      _
    $region7: #{traffic_light_forward.1} parent=1 // pred_check_branch
      %22 = sbr.rel (0) target = $region9
    $region8: #{traffic_light_forward.1} parent=1 // pred_region
      %s24 = ssub.s32 128, 128
      %25 = vsyncadd [#allocation6], %s24
      %s27 = sshll.u32 [#allocation5], 4
      %s28 = int_to_ptr.vmem [resolvable:$true] %s27
      %30 = dma.hbm_to_vmem [thread:$0]  %s1, 128, %s28, [#allocation6]
    $region9: #{traffic_light_forward.1} parent=1 // pred_fallthru
      _
    // Predicated region
    $region10: #{traffic_light_forward.1} parent=1 // pred_check
      _
    $region11: #{traffic_light_forward.1} parent=1 // pred_check_branch
      %32 = sbr.rel (0) target = $region13
    $region12: #{traffic_light_forward.1} parent=1 // pred_region
      _
    $region13: #{traffic_light_forward.1} parent=1 // pred_fallthru
      _
    // Predicated region
    $region14: #{traffic_light_forward.1} parent=1 // pred_check
      _
    $region15: #{traffic_light_forward.1} parent=1 // pred_check_branch
      %34 = sbr.rel (0) target = $region17
    $region16: #{traffic_light_forward.1} parent=1 // pred_region
      %35 = dma.done [#allocation3], 32
    $region17: #{traffic_light_forward.1} parent=1 // pred_fallthru
      _
    // Predicated region
    $region18: #{traffic_light_forward.1} parent=1 // pred_check
      _
    $region19: #{traffic_light_forward.1} parent=1 // pred_check_branch
      %37 = sbr.rel (0) target = $region21
    $region20: #{traffic_light_forward.1} parent=1 // pred_region
      %38 = dma.done [#allocation6], 128
    $region21: #{traffic_light_forward.1} parent=1 // pred_fallthru
      _
    %v39 = vld [vmem:[#allocation2] sm:$0x3]
    %v40 = vld [vmem:[#allocation5] sm:$0xff]
    %v41 = vld [vmem:[%s2] sm:$0x1]
    %v43 = vlaneseq
    %v44 = vshrl.u32 %v43, 7
    %v45 = vsub.s32 0, %v44
    %v46 = vrot.slane %v41, %v45
    %49 = vset.pattern.permute.xlu0 0
    %50 = vperm.xlu0 %49, %v39
    %v51 = vpop.permute.xlu0 %50
    %v53 = vlaneseq
    %v54 = vshrl.u32 %v53, 7
    %v55 = vsub.s32 0, %v54
    %v56 = vrot.slane %v40, %v55
    %v57 = vmul.f32 %v51, %v56
    %v58 = vadd.f32 %v46, %v57
    %59 = vset.pattern.permute.xlu0 1
    %60 = vperm.xlu0 %59, %v39
    %v61 = vpop.permute.xlu0 %60
    %v63 = vlaneseq
    %v64 = vshrl.u32 %v63, 7
    %v65 = vsub.s32 1, %v64
    %v66 = vrot.slane %v40, %v65
    %v67 = vmul.f32 %v61, %v66
    %v68 = vadd.f32 %v58, %v67
    %69 = vset.pattern.permute.xlu0 2
    %70 = vperm.xlu0 %69, %v39
    %v71 = vpop.permute.xlu0 %70
    %v73 = vlaneseq
    %v74 = vshrl.u32 %v73, 7
    %v75 = vsub.s32 2, %v74
    %v76 = vrot.slane %v40, %v75
    %v77 = vmul.f32 %v71, %v76
    %v78 = vadd.f32 %v68, %v77
    %79 = vset.pattern.permute.xlu0 3
    %80 = vperm.xlu0 %79, %v39
    %v81 = vpop.permute.xlu0 %80
    %v83 = vlaneseq
    %v84 = vshrl.u32 %v83, 7
    %v85 = vsub.s32 3, %v84
    %v86 = vrot.slane %v40, %v85
    %v87 = vmul.f32 %v81, %v86
    %v88 = vadd.f32 %v78, %v87
    %89 = vset.pattern.permute.xlu0 4
    %90 = vperm.xlu0 %89, %v39
    %v91 = vpop.permute.xlu0 %90
    %v93 = vlaneseq
    %v94 = vshrl.u32 %v93, 7
    %v95 = vsub.s32 4, %v94
    %v96 = vrot.slane %v40, %v95
    %v97 = vmul.f32 %v91, %v96
    %v98 = vadd.f32 %v88, %v97
    %99 = vset.pattern.permute.xlu0 5
    %100 = vperm.xlu0 %99, %v39
    %v101 = vpop.permute.xlu0 %100
    %v103 = vlaneseq
    %v104 = vshrl.u32 %v103, 7
    %v105 = vsub.s32 5, %v104
    %v106 = vrot.slane %v40, %v105
    %v107 = vmul.f32 %v101, %v106
    %v108 = vadd.f32 %v98, %v107
    %109 = vset.pattern.permute.xlu0 6
    %110 = vperm.xlu0 %109, %v39
    %v111 = vpop.permute.xlu0 %110
    %v113 = vlaneseq
    %v114 = vshrl.u32 %v113, 7
    %v115 = vsub.s32 6, %v114
    %v116 = vrot.slane %v40, %v115
    %v117 = vmul.f32 %v111, %v116
    %v118 = vadd.f32 %v108, %v117
    %119 = vset.pattern.permute.xlu0 7
    %120 = vperm.xlu0 %119, %v39
    %v121 = vpop.permute.xlu0 %120
    %v123 = vlaneseq
    %v124 = vshrl.u32 %v123, 7
    %v125 = vsub.s32 7, %v124
    %v126 = vrot.slane %v40, %v125
    %v127 = vmul.f32 %v121, %v126
    %v128 = vadd.f32 %v118, %v127
    %vm129 = vcmask 41984
    %130 = vst.msk [vmem:[#allocation7] sm:$0x3] %vm129, %v128
    // Predicated region
    $region22: #{traffic_light_forward.1} parent=1 // pred_check
      _
    $region23: #{traffic_light_forward.1} parent=1 // pred_check_branch
      %132 = sbr.rel (0) target = $region25
    $region24: #{traffic_light_forward.1} parent=1 // pred_region
      %s134 = ssub.s32 32, 32
      %135 = vsyncadd [#allocation4], %s134
      %s137 = sshll.u32 [#allocation7], 4
      %s138 = int_to_ptr.vmem [resolvable:$true] %s137
      %140 = dma.vmem_to_hbm [thread:$0]  %s138, 32, %s3, [#allocation4]
    $region25: #{traffic_light_forward.1} parent=1 // pred_fallthru
      _
    // Predicated region
    $region26: #{traffic_light_forward.1} parent=1 // pred_check
      _
    $region27: #{traffic_light_forward.1} parent=1 // pred_check_branch
      %142 = sbr.rel (0) target = $region29
    $region28: #{traffic_light_forward.1} parent=1 // pred_region
      %143 = dma.done [#allocation4], 32
    $region29: #{traffic_light_forward.1} parent=1 // pred_fallthru
      _
    %144 = vsyncpa [#allocation3], 1
    %145 = vsyncpa [#allocation6], 1
    %146 = vsyncpa [#allocation4], 1

</llo_original>
